<compile_context>
chip_gen: v7x
topology: tpu7x:2x2x1
jax: 0.10.0
libtpu: 0.0.40
codegen_flags: <defaults>
</compile_context>

<pallas_src>
import math
from functools import partial

import jax
import jax.numpy as jnp
from jax import lax
from jax.experimental import pallas as pl
from jax.experimental.pallas import tpu as pltpu


# ----------------------------------------------------------------------------
# Small helpers
# ----------------------------------------------------------------------------
def _round_up(x, m):
    return ((x + m - 1) // m) * m


def _layernorm(x, w, b, eps=1e-5):
    mu = jnp.mean(x, axis=-1, keepdims=True)
    var = jnp.mean((x - mu) ** 2, axis=-1, keepdims=True)
    return (x - mu) * lax.rsqrt(var + eps) * w + b


_SQRT_2_OVER_PI = 0.7978845608028654


def _gelu_tanh(x):
    # tanh-approx GELU (one EUP tanh); ~1e-3 abs from exact erf GELU, the
    # standard ViT inference approximation.
    return 0.5 * x * (1.0 + jnp.tanh(_SQRT_2_OVER_PI * (x + 0.044715 * x * x * x)))


def _softmax_rows(s):
    s = s - jnp.max(s, axis=-1, keepdims=True)
    p = jnp.exp(s)
    # approx reciprocal on the EUP slot; ~1e-4 relative vs exact divide.
    return p * pl.reciprocal(jnp.sum(p, axis=-1, keepdims=True), approx=True)


# ----------------------------------------------------------------------------
# VMEM accounting / batch-tile selection
# ----------------------------------------------------------------------------
def _vmem_capacity_bytes():
    try:
        return int(pltpu.get_tpu_info().vmem_capacity_bytes)
    except Exception:
        return 64 << 20        # conservative fallback (v7x per-TensorCore VMEM)


def _layer_vmem_need(bt, s, d, hh):
    f32, bf16 = 4, 2
    m = bt * s
    # per-layer bf16 weights (double-buffered by the pipeline) + f32 rows
    w = 2 * bf16 * (3 * d * d + d * d + 2 * d * hh) + 2 * f32 * (6 * d + hh)
    # resident token blocks (input + output), double-buffered across batch steps
    tok = 4 * f32 * bt * s * d
    # live in-kernel intermediates (f32 values + bf16 matmul-input casts)
    inter = (f32 + bf16) * m * 3 * d       # qkv + bf16 cast
    inter += (f32 + bf16) * m * hh         # MLP hidden + bf16 cast
    inter += 3 * f32 * m * d               # x, LN output, attention accumulator
    inter += 3 * f32 * bt * s * s          # one head's scores / probs / mask
    return w + tok + inter + (4 << 20)     # Mosaic internal-scratch headroom


def _choose_bt(batch, s, d, hh, budget):
    for bt in (8, 4, 2, 1):
        bt = min(bt, batch)
        if _layer_vmem_need(bt, s, d, hh) <= budget:
            return bt
    return 1


# ----------------------------------------------------------------------------
# Kernel 1: patch embedding  (proj + class token + positional embedding)
# Processes Bt images per grid step; output is padded to (Bt, S_pad, D) with
# zero rows so the transformer kernel sees a sublane-dense block.
# ----------------------------------------------------------------------------
def patch_embed_kernel(p_ref, w_ref, b_ref, cls_ref, pos_ref, o_ref):
    bt, n, ppc = p_ref.shape
    d = w_ref.shape[1]
    s_pad = o_ref.shape[1]

    flat = p_ref[...].reshape(bt * n, ppc)
    proj = jnp.dot(flat, w_ref[...], preferred_element_type=jnp.float32) + b_ref[...]
    proj = proj.reshape(bt, n, d)

    cls_row = (cls_ref[...] + pos_ref[0:1, :]).reshape(1, 1, d)
    o_ref[:, 0:1, :] = jnp.broadcast_to(cls_row, (bt, 1, d))
    o_ref[:, 1:n + 1, :] = proj + pos_ref[1:, :]
    if s_pad > n + 1:
        o_ref[:, n + 1:, :] = jnp.zeros((bt, s_pad - (n + 1), d), jnp.float32)


def patch_embed(patches, w, b, cls_tok, pos_emb, s_pad, bt):
    bp, n, ppc = patches.shape
    d = w.shape[1]
    return pl.pallas_call(
        patch_embed_kernel,
        out_shape=jax.ShapeDtypeStruct((bp, s_pad, d), jnp.float32),
        grid=(bp // bt,),
        in_specs=[
            pl.BlockSpec((bt, n, ppc), lambda i: (i, 0, 0)),
            pl.BlockSpec((ppc, d), lambda i: (0, 0)),
            pl.BlockSpec((1, d), lambda i: (0, 0)),
            pl.BlockSpec((1, d), lambda i: (0, 0)),
            pl.BlockSpec((n + 1, d), lambda i: (0, 0)),
        ],
        out_specs=pl.BlockSpec((bt, s_pad, d), lambda i: (i, 0, 0)),
        compiler_params=pltpu.CompilerParams(dimension_semantics=("parallel",)),
    )(patches, w, b, cls_tok, pos_emb)


# ----------------------------------------------------------------------------
# Kernel 2: ALL transformer layers in one pallas_call.
# grid = (B_pad/Bt, L); the (Bt, S_pad, D) token block stays resident in VMEM
# across the "arbitrary" layer axis and is written back to HBM once per step.
# ----------------------------------------------------------------------------
def vit_layers_kernel(num_heads, head_dim, s_valid,
                      x_ref, ln1w_ref, ln1b_ref, wqkv_ref, wproj_ref, bproj_ref,
                      ln2w_ref, ln2b_ref, w1_ref, b1_ref, w2_ref, b2_ref, o_ref):
    D = num_heads * head_dim
    bt, s, _ = o_ref.shape
    layer = pl.program_id(1)

    @pl.when(layer == 0)
    def _():
        o_ref[...] = x_ref[...]          # seed the resident token block

    x = o_ref[...].reshape(bt * s, D)    # (Bt*S, D) f32

    # ---- attention block ----
    h = _layernorm(x, ln1w_ref[...], ln1b_ref[...])
    qkv = jnp.dot(h.astype(jnp.bfloat16), wqkv_ref[...],
                  preferred_element_type=jnp.float32)        # (Bt*S, 3D)
    qkv = qkv.reshape(bt, s, 3 * D)
    wproj = wproj_ref[...]                                   # (D, D) bf16

    mask_keys = s > s_valid
    if mask_keys:
        key_idx = lax.broadcasted_iota(jnp.int32, (bt, s, s), 2)

    # TODO(synk): head-batched dot_general (per-head weight stacks) would
    # remove the unaligned 64-lane qkv slices at real ViT head_dim=64 sizes.
    attn = None
    for hi in range(num_heads):
        lo, hi_ = hi * head_dim, (hi + 1) * head_dim
        qh = qkv[:, :, lo:hi_]           # 1/sqrt(head_dim) folded into wqkv Q cols
        kh = qkv[:, :, D + lo:D + hi_]
        vh = qkv[:, :, 2 * D + lo:2 * D + hi_]
        # scores: contract on the last axis of both operands (no kh.T transpose)
        sc = lax.dot_general(qh.astype(jnp.bfloat16), kh.astype(jnp.bfloat16),
                             dimension_numbers=(((2,), (2,)), ((0,), (0,))),
                             preferred_element_type=jnp.float32)     # (Bt, S, S)
        if mask_keys:
            sc = jnp.where(key_idx < s_valid, sc, -1e30)
        p = _softmax_rows(sc)
        oh = lax.dot_general(p.astype(jnp.bfloat16), vh.astype(jnp.bfloat16),
                             dimension_numbers=(((2,), (1,)), ((0,), (0,))),
                             preferred_element_type=jnp.float32)     # (Bt, S, hd)
        # Fused output projection per head: single (Bt, S, D) accumulator.
        contrib = lax.dot_general(oh.astype(jnp.bfloat16), wproj[lo:hi_, :],
                                  dimension_numbers=(((2,), (0,)), ((), ())),
                                  preferred_element_type=jnp.float32)  # (Bt,S,D)
        attn = contrib if attn is None else attn + contrib

    x = x + attn.reshape(bt * s, D) + bproj_ref[...]

    # ---- feed-forward block ----
    # TODO(synk): for ViT-Large-class shapes on v7x (64 MiB VMEM) the MLP
    # hidden dim should be tiled into H-chunks with an f32 accumulator.
    h2 = _layernorm(x, ln2w_ref[...], ln2b_ref[...])
    f = jnp.dot(h2.astype(jnp.bfloat16), w1_ref[...],
                preferred_element_type=jnp.float32) + b1_ref[...]
    f = _gelu_tanh(f)
    f = jnp.dot(f.astype(jnp.bfloat16), w2_ref[...],
                preferred_element_type=jnp.float32) + b2_ref[...]
    o_ref[...] = (x + f).reshape(bt, s, D)


def vit_layers(x, stk, num_heads, s_valid, bt, vmem_limit):
    bp, s_pad, d = x.shape
    head_dim = d // num_heads
    hh = stk["w1"].shape[2]
    num_layers = stk["wqkv"].shape[0]
    del num_layers  # length comes from the grid via stk["wqkv"].shape[0] below

    def wspec(*shape):
        n = len(shape)
        return pl.BlockSpec((None,) + shape, lambda b, l, _n=n: (l,) + (0,) * _n)

    return pl.pallas_call(
        partial(vit_layers_kernel, num_heads, head_dim, s_valid),
        out_shape=jax.ShapeDtypeStruct((bp, s_pad, d), jnp.float32),
        grid=(bp // bt, stk["wqkv"].shape[0]),
        in_specs=[
            pl.BlockSpec((bt, s_pad, d), lambda b, l: (b, 0, 0)),
            wspec(1, d), wspec(1, d),        # ln1 w, b
            wspec(d, 3 * d),                 # wqkv (bf16, Q cols pre-scaled)
            wspec(d, d), wspec(1, d),        # wproj (bf16), bproj
            wspec(1, d), wspec(1, d),        # ln2 w, b
            wspec(d, hh), wspec(1, hh),      # w1 (bf16), b1
            wspec(hh, d), wspec(1, d),       # w2 (bf16), b2
        ],
        out_specs=pl.BlockSpec((bt, s_pad, d), lambda b, l: (b, 0, 0)),
        compiler_params=pltpu.CompilerParams(
            dimension_semantics=("parallel", "arbitrary"),
            vmem_limit_bytes=vmem_limit),
    )(x, stk["ln1_w"], stk["ln1_b"], stk["wqkv"], stk["wproj"], stk["bproj"],
      stk["ln2_w"], stk["ln2_b"], stk["w1"], stk["b1"], stk["w2"], stk["b2"])


# ----------------------------------------------------------------------------
# Kernel 3: final LayerNorm + pre_head (Linear, Tanh) + head (Linear).
# The class dim of head_w/head_b is pre-padded to a multiple of 128 (lane-
# dense logits store); extra columns are sliced off outside the kernel.
# ----------------------------------------------------------------------------
def head_kernel(x_ref, lnw_ref, lnb_ref, wpre_ref, bpre_ref, whead_ref, bhead_ref,
                feat_ref, logits_ref):
    h = _layernorm(x_ref[...], lnw_ref[...], lnb_ref[...])
    feat = jnp.tanh(jnp.dot(h.astype(jnp.bfloat16), wpre_ref[...],
                            preferred_element_type=jnp.float32) + bpre_ref[...])
    feat_ref[...] = feat
    logits_ref[...] = jnp.dot(feat.astype(jnp.bfloat16), whead_ref[...],
                              preferred_element_type=jnp.float32) + bhead_ref[...]


def head(cls_tok, norm_w, norm_b, pre_w, pre_b, head_w, head_b):
    b, d = cls_tok.shape
    c_pad = head_w.shape[1]
    return pl.pallas_call(
        head_kernel,
        out_shape=(
            jax.ShapeDtypeStruct((b, d), jnp.float32),
            jax.ShapeDtypeStruct((b, c_pad), jnp.float32),
        ),
    )(cls_tok, norm_w, norm_b, pre_w, pre_b, head_w, head_b)


# ----------------------------------------------------------------------------
# Parameter prep: stack per-layer weights on a leading L axis, fold the
# attention scale into wqkv's Q columns, cast matmul weights to bf16, reshape
# 1-D biases / LN params to (1, D) rows, and 128-pad the class dim.
# ----------------------------------------------------------------------------
def prepare_params(params, num_heads):
    D = params["proj_w"].shape[1]
    head_dim = D // num_heads
    scale = 1.0 / math.sqrt(head_dim)
    bf16 = jnp.bfloat16

    def row(v):
        return v.reshape(1, -1).astype(jnp.float32)

    layers = params["layers"]

    def stack(name):
        return jnp.stack([lp[name] for lp in layers], axis=0)

    def stack_row(name):
        return jnp.stack([lp[name].reshape(1, -1) for lp in layers],
                         axis=0).astype(jnp.float32)

    wqkv = stack("wqkv").astype(jnp.float32)
    wqkv = jnp.concatenate([wqkv[:, :, :D] * scale, wqkv[:, :, D:]], axis=2)

    n_classes = params["head_b"].shape[0]
    c_pad = _round_up(max(n_classes, 1), 128)
    head_w = params["head_w"].astype(jnp.float32)
    head_b = params["head_b"].astype(jnp.float32)
    if c_pad > n_classes:
        head_w = jnp.pad(head_w, ((0, 0), (0, c_pad - n_classes)))
        head_b = jnp.pad(head_b, (0, c_pad - n_classes))

    return {
        "n_classes": n_classes,
        "proj_w": params["proj_w"].astype(bf16),
        "proj_b": row(params["proj_b"]),
        "cls": params["cls"].astype(jnp.float32),
        "pos": params["pos"].astype(jnp.float32),
        "norm_w": row(params["norm_w"]),
        "norm_b": row(params["norm_b"]),
        "pre_w": params["pre_w"].astype(bf16),
        "pre_b": row(params["pre_b"]),
        "head_w": head_w.astype(bf16),
        "head_b": head_b.reshape(1, -1),
        "layers": {
            "ln1_w": stack_row("ln1_w"), "ln1_b": stack_row("ln1_b"),
            "wqkv": wqkv.astype(bf16),
            "wproj": stack("wproj").astype(bf16),
            "bproj": stack_row("bproj"),
            "ln2_w": stack_row("ln2_w"), "ln2_b": stack_row("ln2_b"),
            "w1": stack("w1").astype(bf16), "b1": stack_row("b1"),
            "w2": stack("w2").astype(bf16), "b2": stack_row("b2"),
        },
    }


# ----------------------------------------------------------------------------
# Full forward pass (glue in plain JAX, compute in Pallas)
# ----------------------------------------------------------------------------
def vit_forward(x, params, patch_size, num_heads, return_features=False):
    B, C, Himg, Wimg = x.shape
    hp, wp = Himg // patch_size, Wimg // patch_size
    N = hp * wp
    # einops: 'b c (h p1) (w p2) -> b (h w) (p1 p2 c)'  (pure layout glue)
    patches = x.reshape(B, C, hp, patch_size, wp, patch_size)
    patches = patches.transpose(0, 2, 4, 3, 5, 1).reshape(
        B, N, patch_size * patch_size * C)

    prep = prepare_params(params, num_heads)
    D = prep["proj_w"].shape[1]
    Hh = prep["layers"]["w1"].shape[2]

    # Sublane/lane-dense sequence padding (padded keys are masked in-kernel).
    S = N + 1
    s_pad = _round_up(S, 128) if S >= 128 else _round_up(S, 8)

    # Batch tile: amortize per-layer weight DMA over Bt images, VMEM permitting.
    cap = _vmem_capacity_bytes()
    budget = cap - (8 << 20)
    bt = _choose_bt(B, s_pad, D, Hh, budget)
    b_pad = _round_up(B, bt)
    if b_pad > B:
        patches = jnp.pad(patches, ((0, b_pad - B), (0, 0), (0, 0)))

    vmem_limit = int(min(max(_layer_vmem_need(bt, s_pad, D, Hh), 32 << 20),
                         cap - (6 << 20)))

    tok = patch_embed(patches.astype(jnp.bfloat16), prep["proj_w"], prep["proj_b"],
                      prep["cls"], prep["pos"], s_pad, bt)
    # Dropout layers are identity in eval mode; all L layers in one kernel.
    tok = vit_layers(tok, prep["layers"], num_heads, S, bt, vmem_limit)

    # norm(x)[:, 0] == norm(x[:, 0]) since LayerNorm is per-token.
    cls = tok[:B, 0, :]
    feats, logits = head(cls, prep["norm_w"], prep["norm_b"],
                         prep["pre_w"], prep["pre_b"],
                         prep["head_w"], prep["head_b"])
    logits = logits[:, :prep["n_classes"]]
    if return_features:
        return feats, logits
    return logits


# ----------------------------------------------------------------------------
# Deterministic parameter construction (synthetic weights, no checkpoint load)
# All Linear weights are stored pre-transposed as (in_features, out_features)
# so kernels compute y = x @ W + b (equivalent to PyTorch x @ W.T + b).
# ----------------------------------------------------------------------------
def init_vit_params(key, num_layers, num_heads, emb_dim, hidden_dim, patch_size,
                    C, img_shape, n_classes):
    h, w = img_shape
    num_patches = (h // patch_size) * (w // patch_size)
    ppc = patch_size * patch_size * C

    def nrm(k, shape, scale=0.02):
        return (jax.random.normal(k, shape, jnp.float32) * scale).astype(jnp.float32)

    keys = jax.random.split(key, 6 + 4 * num_layers)
    ki = iter(range(len(keys)))

    params = {
        "cls": jax.random.normal(keys[next(ki)], (1, emb_dim), jnp.float32),
        "pos": jax.random.normal(keys[next(ki)], (num_patches + 1, emb_dim), jnp.float32),
        "proj_w": nrm(keys[next(ki)], (ppc, emb_dim)),
        "proj_b": jnp.zeros((emb_dim,), jnp.float32),
        "norm_w": jnp.ones((emb_dim,), jnp.float32),
        "norm_b": jnp.zeros((emb_dim,), jnp.float32),
        "pre_w": nrm(keys[next(ki)], (emb_dim, emb_dim)),
        "pre_b": jnp.zeros((emb_dim,), jnp.float32),
        "head_w": nrm(keys[next(ki)], (emb_dim, n_classes)),
        "head_b": jnp.zeros((n_classes,), jnp.float32),
        "layers": [],
    }
    for _ in range(num_layers):
        lk = jax.random.split(keys[next(ki)], 4)
        params["layers"].append({
            "ln1_w": jnp.ones((emb_dim,), jnp.float32),
            "ln1_b": jnp.zeros((emb_dim,), jnp.float32),
            "wqkv": nrm(lk[0], (emb_dim, 3 * emb_dim)),
            "wproj": nrm(lk[1], (emb_dim, emb_dim)),
            "bproj": jnp.zeros((emb_dim,), jnp.float32),
            "ln2_w": jnp.ones((emb_dim,), jnp.float32),
            "ln2_b": jnp.zeros((emb_dim,), jnp.float32),
            "w1": nrm(lk[2], (emb_dim, hidden_dim)),
            "b1": jnp.zeros((hidden_dim,), jnp.float32),
            "w2": nrm(lk[3], (hidden_dim, emb_dim)),
            "b2": jnp.zeros((emb_dim,), jnp.float32),
        })
    return params


if __name__ == "__main__":
    # Small but representative config.
    B, C, Himg, Wimg = 2, 4, 16, 16
    patch_size = 4
    emb_dim = 32
    num_heads = 4
    hidden_dim = 64
    num_layers = 2
    n_classes = 10

    key = jax.random.PRNGKey(0)
    k_x, k_p = jax.random.split(key)
    x = jax.random.normal(k_x, (B, C, Himg, Wimg), jnp.float32)

    params = init_vit_params(k_p, num_layers, num_heads, emb_dim, hidden_dim,
                             patch_size, C, (Himg, Wimg), n_classes)

    feats, logits = vit_forward(x, params, patch_size, num_heads, return_features=True)
    jax.block_until_ready((feats, logits))

    assert feats.shape == (B, emb_dim)
    assert logits.shape == (B, n_classes)
    print("KERNEL_OK")
</pallas_src>

<mosaic_0001>
module attributes {stable_mosaic.version = 11 : i64} {
  func.func @patch_embed_kernel(%arg0: i32, %arg1: memref<2x16x64xbf16, #tpu.memory_space<vmem>>, %arg2: memref<64x32xbf16, #tpu.memory_space<vmem>>, %arg3: memref<1x32xf32, #tpu.memory_space<vmem>>, %arg4: memref<1x32xf32, #tpu.memory_space<vmem>>, %arg5: memref<17x32xf32, #tpu.memory_space<vmem>>, %arg6: memref<2x24x32xf32, #tpu.memory_space<vmem>>) attributes {dimension_semantics = [#tpu.dimension_semantics<parallel>], iteration_bounds = array<i64: 1>, scalar_prefetch = 0 : i64, scratch_operands = 0 : i64, tpu.core_type = #tpu.core_type<tc>, window_params = [{transform_indices = @transform_0, window_bounds = array<i64: 2, 16, 64>}, {pipeline_mode = #tpu.pipeline_mode<synchronous>, transform_indices = @transform_1, window_bounds = array<i64: 64, 32>}, {pipeline_mode = #tpu.pipeline_mode<synchronous>, transform_indices = @transform_2, window_bounds = array<i64: 1, 32>}, {pipeline_mode = #tpu.pipeline_mode<synchronous>, transform_indices = @transform_3, window_bounds = array<i64: 1, 32>}, {pipeline_mode = #tpu.pipeline_mode<synchronous>, transform_indices = @transform_4, window_bounds = array<i64: 17, 32>}, {transform_indices = @transform_5, window_bounds = array<i64: 2, 24, 32>}]} {
    %c0 = arith.constant 0 : index
    %c0_0 = arith.constant 0 : index
    %c0_1 = arith.constant 0 : index
    %0 = vector.load %arg1[%c0, %c0_0, %c0_1] : memref<2x16x64xbf16, #tpu.memory_space<vmem>>, vector<2x16x64xbf16>
    %1 = vector.shape_cast %0 : vector<2x16x64xbf16> to vector<32x64xbf16>
    %c0_2 = arith.constant 0 : index
    %c0_3 = arith.constant 0 : index
    %2 = vector.load %arg2[%c0_2, %c0_3] : memref<64x32xbf16, #tpu.memory_space<vmem>>, vector<64x32xbf16>
    %cst = arith.constant dense<0.000000e+00> : vector<32x32xf32>
    %3 = tpu.matmul %1, %2, %cst {dimension_numbers = #tpu.dot_dimension_numbers<[1], [0], [0], [1], [0, 0, 1, 1], [], []>} : vector<32x64xbf16>, vector<64x32xbf16>, vector<32x32xf32> -> vector<32x32xf32>
    %c0_4 = arith.constant 0 : index
    %c0_5 = arith.constant 0 : index
    %4 = vector.load %arg3[%c0_4, %c0_5] : memref<1x32xf32, #tpu.memory_space<vmem>>, vector<1x32xf32>
    %5 = vector.broadcast %4 : vector<1x32xf32> to vector<32x32xf32>
    %6 = arith.addf %3, %5 : vector<32x32xf32>
    %7 = vector.shape_cast %6 : vector<32x32xf32> to vector<2x16x32xf32>
    %c0_6 = arith.constant 0 : index
    %c0_7 = arith.constant 0 : index
    %8 = vector.load %arg4[%c0_6, %c0_7] : memref<1x32xf32, #tpu.memory_space<vmem>>, vector<1x32xf32>
    %c0_8 = arith.constant 0 : index
    %c0_9 = arith.constant 0 : index
    %9 = vector.load %arg5[%c0_8, %c0_9] : memref<17x32xf32, #tpu.memory_space<vmem>>, vector<1x32xf32>
    %10 = arith.addf %8, %9 : vector<1x32xf32>
    %11 = vector.shape_cast %10 : vector<1x32xf32> to vector<1x1x32xf32>
    %12 = vector.shape_cast %11 : vector<1x1x32xf32> to vector<1x1x32xf32>
    %13 = vector.broadcast %12 : vector<1x1x32xf32> to vector<2x1x32xf32>
    %c0_10 = arith.constant 0 : index
    %c0_11 = arith.constant 0 : index
    %c0_12 = arith.constant 0 : index
    %14 = vector.load %arg6[%c0_10, %c0_11, %c0_12] : memref<2x24x32xf32, #tpu.memory_space<vmem>>, vector<2x1x32xf32>
    tpu.vector_store %arg6[%c0_10, %c0_11, %c0_12], %13 {strides = array<i32>} : memref<2x24x32xf32, #tpu.memory_space<vmem>>, vector<2x1x32xf32>,
    %c1 = arith.constant 1 : index
    %c0_13 = arith.constant 0 : index
    %15 = vector.load %arg5[%c1, %c0_13] : memref<17x32xf32, #tpu.memory_space<vmem>>, vector<16x32xf32>
    %16 = vector.shape_cast %15 : vector<16x32xf32> to vector<1x16x32xf32>
    %17 = vector.broadcast %16 : vector<1x16x32xf32> to vector<2x16x32xf32>
    %18 = arith.addf %7, %17 : vector<2x16x32xf32>
    %c0_14 = arith.constant 0 : index
    %c1_15 = arith.constant 1 : index
    %c0_16 = arith.constant 0 : index
    %19 = vector.load %arg6[%c0_14, %c1_15, %c0_16] : memref<2x24x32xf32, #tpu.memory_space<vmem>>, vector<2x16x32xf32>
    tpu.vector_store %arg6[%c0_14, %c1_15, %c0_16], %18 {strides = array<i32>} : memref<2x24x32xf32, #tpu.memory_space<vmem>>, vector<2x16x32xf32>,
    %cst_17 = arith.constant 0.000000e+00 : f32
    %20 = vector.broadcast %cst_17 : f32 to vector<2x7x32xf32>
    %c0_18 = arith.constant 0 : index
    %c17 = arith.constant 17 : index
    %c0_19 = arith.constant 0 : index
    %21 = vector.load %arg6[%c0_18, %c17, %c0_19] : memref<2x24x32xf32, #tpu.memory_space<vmem>>, vector<2x7x32xf32>
    tpu.vector_store %arg6[%c0_18, %c17, %c0_19], %20 {strides = array<i32>} : memref<2x24x32xf32, #tpu.memory_space<vmem>>, vector<2x7x32xf32>,
    return
  }
  func.func @transform_0(%arg0: i32) -> (i32, i32, i32) {
    %c0_i32 = arith.constant 0 : i32
    %c0_i32_0 = arith.constant 0 : i32
    %c0_i32_1 = arith.constant 0 : i32
    return %arg0, %c0_i32, %c0_i32_0 : i32, i32, i32
  }
  func.func @transform_1(%arg0: i32) -> (i32, i32) {
    %c0_i32 = arith.constant 0 : i32
    %c0_i32_0 = arith.constant 0 : i32
    %c0_i32_1 = arith.constant 0 : i32
    return %c0_i32, %c0_i32_0 : i32, i32
  }
  func.func @transform_2(%arg0: i32) -> (i32, i32) {
    %c0_i32 = arith.constant 0 : i32
    %c0_i32_0 = arith.constant 0 : i32
    %c0_i32_1 = arith.constant 0 : i32
    return %c0_i32, %c0_i32_0 : i32, i32
  }
  func.func @transform_3(%arg0: i32) -> (i32, i32) {
    %c0_i32 = arith.constant 0 : i32
    %c0_i32_0 = arith.constant 0 : i32
    %c0_i32_1 = arith.constant 0 : i32
    return %c0_i32, %c0_i32_0 : i32, i32
  }
  func.func @transform_4(%arg0: i32) -> (i32, i32) {
    %c0_i32 = arith.constant 0 : i32
    %c0_i32_0 = arith.constant 0 : i32
    %c0_i32_1 = arith.constant 0 : i32
    return %c0_i32, %c0_i32_0 : i32, i32
  }
  func.func @transform_5(%arg0: i32) -> (i32, i32, i32) {
    %c0_i32 = arith.constant 0 : i32
    %c0_i32_0 = arith.constant 0 : i32
    %c0_i32_1 = arith.constant 0 : i32
    return %arg0, %c0_i32, %c0_i32_0 : i32, i32, i32
  }
}

</mosaic_0001>

<llo_original>
// kernel: tpu_custom_call.1
$region0: #{tpu_custom_call.1}
  #allocation0 [shape = 'u32[]', space=smem, size = 0x4, offset = 0x4, fixed_abs, tag = 'smem constant byte address 0x4 - core index']
  #allocation1 [shape = 'u32[144,128]{1,0:T(1,128)}', space=vmem, size = 0x12000, scoped, tag = 'internal scratch']
  %s0 = inlined_call_operand.vmem [shape: bf16[2,16,64], index: 0, kind: input, shape index: {}]
  %s1 = inlined_call_operand.vmem [shape: bf16[64,32], index: 1, kind: input, shape index: {}]
  %s2 = inlined_call_operand.vmem [shape: f32[1,32], index: 2, kind: input, shape index: {}]
  %s3 = inlined_call_operand.vmem [shape: f32[1,32], index: 3, kind: input, shape index: {}]
  %s4 = inlined_call_operand.vmem [shape: f32[17,32], index: 4, kind: input, shape index: {}]
  %s5 = inlined_call_operand.hbm [shape: f32[2,24,32], index: 5, kind: output, shape index: {}]
  %s6 = sld [smem:[#allocation0]]
  $region30: #{tpu_custom_call.1} parent=0
    _
  %s8 = ssub.s32 1, %s6
  %s9 = scalar_select 0, %s8, %s6
  $region1: #{tpu_custom_call.1} parent=0
    #allocation2 [shape = 'u8[24576]{0}', space=vmem, size = 0x6000, scoped, tag = 'output window, operand 0, single buffered']
    #allocation3 [shape = 's32[1]{0}', space=sflag, size = 0x4, scoped, tag = 'scoped memory for tpu_custom_call.1']
    %10 = vsyncpa [#allocation3], 0
    // Predicated region
    $region2: #{tpu_custom_call.1} parent=1 // pred_check
      _
    $region3: #{tpu_custom_call.1} parent=1 // pred_check_branch
      %12 = sbr.rel (0) target = $region5
    $region4: #{tpu_custom_call.1} parent=1 // pred_region
      _
    $region5: #{tpu_custom_call.1} parent=1 // pred_fallthru
      _
    // Predicated region
    $region6: #{tpu_custom_call.1} parent=1 // pred_check
      _
    $region7: #{tpu_custom_call.1} parent=1 // pred_check_branch
      %14 = sbr.rel (0) target = $region9
    $region8: #{tpu_custom_call.1} parent=1 // pred_region
      _
    $region9: #{tpu_custom_call.1} parent=1 // pred_fallthru
      _
    // Predicated region
    $region10: #{tpu_custom_call.1} parent=1 // pred_check
      _
    $region11: #{tpu_custom_call.1} parent=1 // pred_check_branch
      %16 = sbr.rel (0) target = $region13
    $region12: #{tpu_custom_call.1} parent=1 // pred_region
      _
    $region13: #{tpu_custom_call.1} parent=1 // pred_fallthru
      _
    // Predicated region
    $region14: #{tpu_custom_call.1} parent=1 // pred_check
      _
    $region15: #{tpu_custom_call.1} parent=1 // pred_check_branch
      %18 = sbr.rel (0) target = $region17
    $region16: #{tpu_custom_call.1} parent=1 // pred_region
      _
    $region17: #{tpu_custom_call.1} parent=1 // pred_fallthru
      _
    // Predicated region
    $region18: #{tpu_custom_call.1} parent=1 // pred_check
      _
    $region19: #{tpu_custom_call.1} parent=1 // pred_check_branch
      %20 = sbr.rel (0) target = $region21
    $region20: #{tpu_custom_call.1} parent=1 // pred_region
      _
    $region21: #{tpu_custom_call.1} parent=1 // pred_fallthru
      _
    %v22 = vld [vmem:[%s0] sm:$0xf]
    %v23 = vld [vmem:[%s0 + $0x4] sm:$0xf]
    %v24 = vld [vmem:[%s0 + $0x8] sm:$0xf]
    %v25 = vld [vmem:[%s0 + $0xc] sm:$0xf]
    %v26 = vld [vmem:[%s1] sm:$0xf]
    %v27 = vld [vmem:[%s1 + $0x4] sm:$0xf]
    %v28 = vld [vmem:[%s1 + $0x8] sm:$0xf]
    %v29 = vld [vmem:[%s1 + $0xc] sm:$0xf]
    %v30 = vld [vmem:[%s1 + $0x10] sm:$0xf]
    %v31 = vld [vmem:[%s1 + $0x14] sm:$0xf]
    %v32 = vld [vmem:[%s1 + $0x18] sm:$0xf]
    %v33 = vld [vmem:[%s1 + $0x1c] sm:$0xf]
    %v34 = vld [vmem:[%s2] sm:$0x1]
    %v36 = vlaneseq
    %v37 = vshrl.u32 %v36, 7
    %v38 = vsub.s32 0, %v37
    %v39 = vrot.slane %v34, %v38
    %v45 = vunpack.c.l.b16 %v22
    %v46 = vunpack.c.l.b16 %v23
    %v47 = vunpack.c.l.b16 %v24
    %v48 = vunpack.c.l.b16 %v25
    %v49 = vpack.c.b16 %v46, %v45
    %v50 = vpack.c.b16 %v48, %v47
    %v59 = vunpack.c.l.b16 %v26
    %v60 = vunpack.c.l.b16 %v27
    %v61 = vunpack.c.l.b16 %v28
    %v62 = vunpack.c.l.b16 %v29
    %v63 = vunpack.c.l.b16 %v30
    %v64 = vunpack.c.l.b16 %v31
    %v65 = vunpack.c.l.b16 %v32
    %v66 = vunpack.c.l.b16 %v33
    %v67 = vpack.c.b16 %v60, %v59
    %v68 = vpack.c.b16 %v62, %v61
    %v69 = vpack.c.b16 %v64, %v63
    %v70 = vpack.c.b16 %v66, %v65
    %vm75 = vcmask 523264
    %v77 = vsel %vm75, %v49, 0
    %v80 = vsel %vm75, %v50, 0
    %82 = vmatprep.subr.bf16.mxu0 0
    %83 = vmatpush1.bf16.msra.mxu0 %v67
    %84 = vmatprep.subr.bf16.mxu0 0
    %85 = vmatpush1.bf16.msra.mxu0 %v68
    %86 = vmatprep.subr.bf16.mxu0 0
    %87 = vmatpush1.bf16.msra.mxu0 %v69
    %88 = vmatprep.subr.bf16.mxu0 0
    %89 = vmatpush1.bf16.msra.mxu0 %v70
    %90 = vmatprep.subr.bf16.mxu0 0
    %91 = vmatpush1.bf16.msra.mxu0 0
    %92 = vmatprep.subr.bf16.mxu0 0
    %93 = vmatpush1.bf16.msra.mxu0 0
    %94 = vmatprep.subr.bf16.mxu0 0
    %95 = vmatpush1.bf16.msra.mxu0 0
    %96 = vmatprep.subr.bf16.mxu0 0
    %97 = vmatpush1.bf16.msra.mxu0 0
    %98 = vmatprep.subr.bf16.mxu0 0
    %99 = vmatpush1.bf16.msra.mxu0 0
    %100 = vmatprep.subr.bf16.mxu0 0
    %101 = vmatpush1.bf16.msra.mxu0 0
    %102 = vmatprep.subr.bf16.mxu0 0
    %103 = vmatpush1.bf16.msra.mxu0 0
    %104 = vmatprep.subr.bf16.mxu0 0
    %105 = vmatpush1.bf16.msra.mxu0 0
    %106 = vmatprep.subr.bf16.mxu0 0
    %107 = vmatpush1.bf16.msra.mxu0 0
    %108 = vmatprep.subr.bf16.mxu0 0
    %109 = vmatpush1.bf16.msra.mxu0 0
    %110 = vmatprep.subr.bf16.mxu0 0
    %111 = vmatpush1.bf16.msra.mxu0 0
    %112 = vmatprep.subr.bf16.mxu0 0
    %113 = vmatpush1.bf16.msra.mxu0 0
    %114 = vmatprep.mubr.bf16.mxu0 0
    %115 = vmatmul.mubr.bf16.gmra.mrb[0].mxu0 %v77
    %v116 = vpop.f32.mrb[0].mxu0
    %v117 = vadd.f32 %v39, %v116
    %v118 = vpop.f32.mrb[0].mxu0
    %v119 = vpop.f32.mrb[0].mxu0
    %v120 = vadd.f32 %v39, %v119
    %v121 = vpop.f32.mrb[0].mxu0
    %122 = vmatprep.mubr.bf16.mxu0 0
    %123 = vmatmul.mubr.bf16.gmra.mrb[0].mxu0 %v80
    %v124 = vpop.f32.mrb[0].mxu0
    %v125 = vadd.f32 %v39, %v124
    %v126 = vpop.f32.mrb[0].mxu0
    %v127 = vpop.f32.mrb[0].mxu0
    %v128 = vadd.f32 %v39, %v127
    %v129 = vpop.f32.mrb[0].mxu0
    %130 = vdwg.mxu0
    %v131 = vld [vmem:[%s3] sm:$0x1]
    %v132 = vld [vmem:[%s4] sm:$0x1]
    %v133 = vadd.f32 %v131, %v132
    %vm134 = vcmask 253952
    %135 = vst.msk [vmem:[#allocation2] sm:$0x1] %vm134, %v133
    %136 = vst.msk [vmem:[#allocation2 + $0x18] sm:$0x1] %vm134, %v133
    %v137 = vld [vmem:[%s4 + $0x1] sm:$0xff]
    %v138 = vld [vmem:[%s4 + $0x9] sm:$0xff]
    %v139 = vadd.f32 %v117, %v137
    %v140 = vadd.f32 %v120, %v138
    %v141 = vadd.f32 %v125, %v137
    %v142 = vadd.f32 %v128, %v138
    %vm143 = vcmask 261120
    %144 = vst.msk [vmem:[#allocation2 + $0x1] sm:$0xff] %vm143, %v139
    %145 = vst.msk [vmem:[#allocation2 + $0x9] sm:$0xff] %vm143, %v140
    %146 = vst.msk [vmem:[#allocation2 + $0x19] sm:$0xff] %vm143, %v141
    %147 = vst.msk [vmem:[#allocation2 + $0x21] sm:$0xff] %vm143, %v142
    %vm148 = vcmask 260096
    %149 = vst.msk [vmem:[#allocation2 + $0x11] sm:$0x7f] %vm148, 0.0
    %150 = vst.msk [vmem:[#allocation2 + $0x29] sm:$0x7f] %vm148, 0.0
    // Predicated region
    $region22: #{tpu_custom_call.1} parent=1 // pred_check
      _
    $region23: #{tpu_custom_call.1} parent=1 // pred_check_branch
      %152 = sbr.rel (0) target = $region25
    $region24: #{tpu_custom_call.1} parent=1 // pred_region
      %s154 = ssub.s32 768, 768
      %155 = vsyncadd [#allocation3], %s154
      %s156 = sshll.u32 [#allocation2], 4
      %s157 = int_to_ptr.vmem [resolvable:$true] %s156
      %162 = dma.vmem_to_hbm [thread:$0]  %s157, 768, %s5, [#allocation3], 128, 128, 8
    $region25: #{tpu_custom_call.1} parent=1 // pred_fallthru
      _
    // Predicated region
    $region26: #{tpu_custom_call.1} parent=1 // pred_check
      _
    $region27: #{tpu_custom_call.1} parent=1 // pred_check_branch
      %164 = sbr.rel (0) target = $region29
    $region28: #{tpu_custom_call.1} parent=1 // pred_region
      %165 = dma.done [#allocation3], 768
    $region29: #{tpu_custom_call.1} parent=1 // pred_fallthru
      _
    %166 = vsyncpa [#allocation3], 1

</llo_original>
